<compile_context>
chip_gen: v5e
topology: v5e:2x2
jax: 0.10.0
libtpu: 0.0.40
codegen_flags: <defaults>
</compile_context>

<pallas_src>
import functools

import jax
import jax.numpy as jnp
import numpy as np
from jax import lax
from jax.experimental import pallas as pl
from jax.experimental.pallas import tpu as pltpu

NEG_SLOPE = 0.01          # F.leaky_relu default
KH = KW = 8               # conv1 kernel size
STRIDE = 4                # conv1 stride
PAD = 1                   # conv1 padding


def _leaky(x):
    return jnp.where(x >= 0, x, NEG_SLOPE * x)


# --------------------------- fused Pallas kernel ---------------------------

def fused_mlp_kernel(pats_ref, wmat_ref, wpk_ref, bias_ref, o_ref, act_ref,
                     *, B, S, OC, H1, H2, OUT):
    """conv1 (+bias, leaky) -> 2x2 maxpool -> fc1 -> fc2 -> fc3 (all leaky).

    pats: (4*S*B, K) bf16, row = w*S*B + s*B + b  (w = pool-window offset,
                                                   s = pooled position, b = batch)
    wmat: (K, OC)    bf16 dense conv weight (rows in (ic, kh, kw) order)
    wpk:  (in+H1+H2, 128) bf16: rows [0,in)=fc1 (s,c)-ordered, [in,in+H1)=fc2,
                                 [in+H1, in+H1+H2)=fc3
    bias: (4, 128)   f32: rows = conv_b, fc1_b, fc2_b, fc3_b
    Only the final (B, OUT) result is stored back to HBM.
    """
    in_size = S * OC
    SB = S * B

    # conv1 on the MXU: one dense bf16 matmul, f32 accumulation.
    conv = jnp.dot(pats_ref[...], wmat_ref[...],
                   preferred_element_type=jnp.float32)            # (4*S*B, OC)

    # 2x2 max-pool == elementwise max over the 4 pool-offset row blocks.
    # Bias is constant within a pool window and leaky_relu is monotone, so
    # pool-first then bias+activation == leaky(conv + b) -> pool.
    pooled = jnp.maximum(jnp.maximum(conv[0 * SB:1 * SB], conv[1 * SB:2 * SB]),
                         jnp.maximum(conv[2 * SB:3 * SB], conv[3 * SB:4 * SB]))
    cb = bias_ref[0:1, 0:OC]                                      # (1, OC) f32
    act = _leaky(pooled + cb)                                     # (S*B, OC) f32

    # Relayout: move s from the sublane axis onto the lane axis so the fc1
    # input is a single (B, in_size) row-major tile.  16 tiny static stores.
    for s in range(S):
        act_ref[:, s * OC:(s + 1) * OC] = act[s * B:(s + 1) * B, :]
    act2 = act_ref[...].astype(jnp.bfloat16)                      # (B, in_size)

    w1 = wpk_ref[0:in_size, 0:H1]
    b1 = bias_ref[1:2, 0:H1]
    h = _leaky(jnp.dot(act2, w1, preferred_element_type=jnp.float32) + b1)

    w2 = wpk_ref[in_size:in_size + H1, 0:H2]
    b2 = bias_ref[2:3, 0:H2]
    h = _leaky(jnp.dot(h.astype(jnp.bfloat16), w2,
                       preferred_element_type=jnp.float32) + b2)

    w3 = wpk_ref[in_size + H1:in_size + H1 + H2, 0:OUT]
    b3 = bias_ref[3:4, 0:OUT]
    o_ref[...] = _leaky(jnp.dot(h.astype(jnp.bfloat16), w3,
                                preferred_element_type=jnp.float32) + b3)


# ------------------------------- wrappers ----------------------------------

def prepare_params(params):
    """One-time re-layout of the PyTorch-style parameters into kernel form."""
    cw, cb, w1, b1, w2, b2, w3, b3 = params
    OC, IC, kh, kw = cw.shape
    K = IC * kh * kw
    in_size, H1 = w1.shape
    H2 = w2.shape[1]
    OUT = w3.shape[1]
    S = in_size // OC
    assert S * OC == in_size
    LANES = 128
    assert max(OC, H1, H2, OUT) <= LANES

    # Dense conv weight, rows in (ic, kh, kw) order (matches patch lanes).
    wmat = cw.reshape(OC, K).T.astype(jnp.bfloat16)               # (K, OC)

    # fc1 rows permuted from PyTorch's (c, s) flatten order to our (s, c).
    w1k = w1.reshape(OC, S, H1).transpose(1, 0, 2).reshape(in_size, H1)

    def put(dst, r0, a):
        a = jnp.asarray(a, dst.dtype)
        return dst.at[r0:r0 + a.shape[0], :a.shape[1]].set(a)

    # bf16 weight slab: fc1 / fc2 / fc3 stacked along rows (16-aligned here).
    wpk = jnp.zeros((in_size + H1 + H2, LANES), jnp.bfloat16)
    wpk = put(wpk, 0, w1k)
    wpk = put(wpk, in_size, w2)
    wpk = put(wpk, in_size + H1, w3)

    # f32 bias slab: conv_b / fc1_b / fc2_b / fc3_b, one row each.
    bias = jnp.zeros((4, LANES), jnp.float32)
    bias = put(bias, 0, cb[None, :])
    bias = put(bias, 1, b1[None, :])
    bias = put(bias, 2, b2[None, :])
    bias = put(bias, 3, b3[None, :])
    return wmat, wpk, bias


def _build_patches(x, PH, PW):
    """im2col restricted to the conv positions that survive pooling, grouped
    by the 2x2 pool-window offset.  Returns (4*S*B, C*KH*KW) bf16 with
        row  = w*S*B + s*B + b      (w = 2*dh + dw, s = ph*PW + pw)
        lane = c*KH*KW + kh*KW + kw
    Relies on KH == 2*STRIDE so the (ph, kh) unfolding is a plain reshape.
    """
    B, C, H, W = x.shape
    assert KH == 2 * STRIDE and KW == 2 * STRIDE
    xp = jnp.pad(x, ((0, 0), (0, 0), (PAD, PAD), (PAD, PAD)))
    blocks = []
    for dh in range(2):
        for dw in range(2):
            r0, c0 = STRIDE * dh, STRIDE * dw
            blk = xp[:, :, r0:r0 + KH * PH, c0:c0 + KW * PW]      # (B,C,8PH,8PW)
            blk = blk.reshape(B, C, PH, KH, PW, KW)
            blk = blk.transpose(2, 4, 0, 1, 3, 5)                 # (PH,PW,B,C,KH,KW)
            blocks.append(blk.reshape(PH * PW * B, C * KH * KW))  # (S*B, K)
    return jnp.concatenate(blocks, axis=0).astype(jnp.bfloat16)   # (4*S*B, K)


def mlp_forward(x, wmat, wpk, bias, *, in_size, hidden, out_size):
    B, C, H, W = x.shape
    OH = (H + 2 * PAD - KH) // STRIDE + 1
    OW = (W + 2 * PAD - KW) // STRIDE + 1
    PH, PW = OH // 2, OW // 2
    OC = wmat.shape[1]
    S = PH * PW
    assert S * OC == in_size

    pats = _build_patches(x, PH, PW)                              # (4*S*B, K) bf16

    kernel = functools.partial(fused_mlp_kernel, B=B, S=S, OC=OC,
                               H1=hidden, H2=hidden, OUT=out_size)
    vmem = pl.BlockSpec(memory_space=pltpu.MemorySpace.VMEM)
    # Total VMEM residency ~170 KiB: far under the scoped default on
    # v5e / v6e / v7x; single program, no grid (latency-bound size).
    return pl.pallas_call(
        kernel,
        out_shape=jax.ShapeDtypeStruct((B, out_size), jnp.float32),
        in_specs=[vmem, vmem, vmem, vmem],
        out_specs=vmem,
        scratch_shapes=[pltpu.VMEM((B, in_size), jnp.float32)],
    )(pats, wmat, wpk, bias)


# --------------------------- pure-JAX reference -----------------------------

def mlp_reference(x, params):
    cw, cb, w1, b1, w2, b2, w3, b3 = params
    conv = lax.conv_general_dilated(
        x, cw, window_strides=(STRIDE, STRIDE),
        padding=((PAD, PAD), (PAD, PAD)),
        dimension_numbers=('NCHW', 'OIHW', 'NCHW')) + cb[None, :, None, None]
    a = _leaky(conv)
    pool = lax.reduce_window(a, -jnp.inf, lax.max,
                             (1, 1, 2, 2), (1, 1, 2, 2), 'VALID')
    flat = pool.reshape(x.shape[0], -1)
    h = _leaky(flat @ w1 + b1)
    h = _leaky(h @ w2 + b2)
    h = _leaky(h @ w3 + b3)
    return h


if __name__ == "__main__":
    # B=2, C=4, H=W=38  => conv out 9x9 -> pool 4x4 -> in_size = 4*4*4 = 64
    B, C, H, W = 2, 4, 38, 38
    IN_SIZE, HIDDEN, OUT_SIZE = 64, 32, 6

    key = jax.random.PRNGKey(0)
    kx, k0, k1, k2, k3, k4, k5, k6, k7 = jax.random.split(key, 9)

    x = jax.random.normal(kx, (B, C, H, W), jnp.float32)

    conv_w = 0.05 * jax.random.normal(k0, (4, 4, KH, KW), jnp.float32)  # (OC,IC,KH,KW)
    conv_b = 0.05 * jax.random.normal(k1, (4,), jnp.float32)
    fc1_w = 0.1 * jax.random.normal(k2, (IN_SIZE, HIDDEN), jnp.float32)
    fc1_b = 0.1 * jax.random.normal(k3, (HIDDEN,), jnp.float32)
    fc2_w = 0.1 * jax.random.normal(k4, (HIDDEN, HIDDEN), jnp.float32)
    fc2_b = 0.1 * jax.random.normal(k5, (HIDDEN,), jnp.float32)
    fc3_w = 0.1 * jax.random.normal(k6, (HIDDEN, OUT_SIZE), jnp.float32)
    fc3_b = 0.1 * jax.random.normal(k7, (OUT_SIZE,), jnp.float32)
    params = (conv_w, conv_b, fc1_w, fc1_b, fc2_w, fc2_b, fc3_w, fc3_b)

    wmat, wpk, bias = prepare_params(params)        # one-time weight re-layout
    fwd = jax.jit(mlp_forward,
                  static_argnames=("in_size", "hidden", "out_size"))

    out = jax.block_until_ready(
        fwd(x, wmat, wpk, bias,
            in_size=IN_SIZE, hidden=HIDDEN, out_size=OUT_SIZE))
    ref = jax.block_until_ready(mlp_reference(x, params))

    assert out.shape == (B, OUT_SIZE), out.shape
    # bf16 weights/patches with f32 accumulation -> ~1e-2 level agreement.
    np.testing.assert_allclose(np.asarray(out), np.asarray(ref),
                               rtol=2e-2, atol=2e-2)
    print("KERNEL_OK")
</pallas_src>

<mosaic_0001>
module attributes {stable_mosaic.version = 11 : i64} {
  func.func @fused_mlp_kernel(%arg0: memref<128x256xbf16, #tpu.memory_space<vmem>>, %arg1: memref<256x4xbf16, #tpu.memory_space<vmem>>, %arg2: memref<128x128xbf16, #tpu.memory_space<vmem>>, %arg3: memref<4x128xf32, #tpu.memory_space<vmem>>, %arg4: memref<2x6xf32, #tpu.memory_space<vmem>>, %arg5: memref<2x64xf32, #tpu.memory_space<vmem>>) attributes {dimension_semantics = [], scalar_prefetch = 0 : i64, scratch_operands = 1 : i64, tpu.core_type = #tpu.core_type<tc>} {
    %c0 = arith.constant 0 : index
    %c0_0 = arith.constant 0 : index
    %0 = vector.load %arg0[%c0, %c0_0] : memref<128x256xbf16, #tpu.memory_space<vmem>>, vector<128x256xbf16>
    %c0_1 = arith.constant 0 : index
    %c0_2 = arith.constant 0 : index
    %1 = vector.load %arg1[%c0_1, %c0_2] : memref<256x4xbf16, #tpu.memory_space<vmem>>, vector<256x4xbf16>
    %cst = arith.constant dense<0.000000e+00> : vector<128x4xf32>
    %2 = tpu.matmul %0, %1, %cst {dimension_numbers = #tpu.dot_dimension_numbers<[1], [0], [0], [1], [0, 0, 1, 1], [], []>} : vector<128x256xbf16>, vector<256x4xbf16>, vector<128x4xf32> -> vector<128x4xf32>
    %3 = vector.extract_strided_slice %2 {offsets = [0, 0], sizes = [32, 4], strides = [1, 1]} : vector<128x4xf32> to vector<32x4xf32>
    %4 = vector.extract_strided_slice %2 {offsets = [32, 0], sizes = [32, 4], strides = [1, 1]} : vector<128x4xf32> to vector<32x4xf32>
    %5 = arith.maximumf %3, %4 : vector<32x4xf32>
    %6 = vector.extract_strided_slice %2 {offsets = [64, 0], sizes = [32, 4], strides = [1, 1]} : vector<128x4xf32> to vector<32x4xf32>
    %7 = vector.extract_strided_slice %2 {offsets = [96, 0], sizes = [32, 4], strides = [1, 1]} : vector<128x4xf32> to vector<32x4xf32>
    %8 = arith.maximumf %6, %7 : vector<32x4xf32>
    %9 = arith.maximumf %5, %8 : vector<32x4xf32>
    %c0_3 = arith.constant 0 : index
    %c0_4 = arith.constant 0 : index
    %10 = vector.load %arg3[%c0_3, %c0_4] : memref<4x128xf32, #tpu.memory_space<vmem>>, vector<1x4xf32>
    %11 = vector.broadcast %10 : vector<1x4xf32> to vector<32x4xf32>
    %12 = arith.addf %9, %11 : vector<32x4xf32>
    %cst_5 = arith.constant 0.000000e+00 : f32
    %13 = vector.broadcast %cst_5 : f32 to vector<32x4xf32>
    %14 = arith.cmpf oge, %12, %13 : vector<32x4xf32>
    %cst_6 = arith.constant 0.00999999977 : f32
    %15 = vector.broadcast %cst_6 : f32 to vector<32x4xf32>
    %16 = arith.mulf %15, %12 : vector<32x4xf32>
    %17 = arith.select %14, %12, %16 : vector<32x4xi1>, vector<32x4xf32>
    %18 = vector.extract_strided_slice %17 {offsets = [0, 0], sizes = [2, 4], strides = [1, 1]} : vector<32x4xf32> to vector<2x4xf32>
    %c0_7 = arith.constant 0 : index
    %c0_8 = arith.constant 0 : index
    %19 = vector.load %arg5[%c0_7, %c0_8] : memref<2x64xf32, #tpu.memory_space<vmem>>, vector<2x4xf32>
    tpu.vector_store %arg5[%c0_7, %c0_8], %18 {strides = array<i32>} : memref<2x64xf32, #tpu.memory_space<vmem>>, vector<2x4xf32>,
    %20 = vector.extract_strided_slice %17 {offsets = [2, 0], sizes = [2, 4], strides = [1, 1]} : vector<32x4xf32> to vector<2x4xf32>
    %c0_9 = arith.constant 0 : index
    %c4 = arith.constant 4 : index
    %21 = vector.load %arg5[%c0_9, %c4] : memref<2x64xf32, #tpu.memory_space<vmem>>, vector<2x4xf32>
    tpu.vector_store %arg5[%c0_9, %c4], %20 {strides = array<i32>} : memref<2x64xf32, #tpu.memory_space<vmem>>, vector<2x4xf32>,
    %22 = vector.extract_strided_slice %17 {offsets = [4, 0], sizes = [2, 4], strides = [1, 1]} : vector<32x4xf32> to vector<2x4xf32>
    %c0_10 = arith.constant 0 : index
    %c8 = arith.constant 8 : index
    %23 = vector.load %arg5[%c0_10, %c8] : memref<2x64xf32, #tpu.memory_space<vmem>>, vector<2x4xf32>
    tpu.vector_store %arg5[%c0_10, %c8], %22 {strides = array<i32>} : memref<2x64xf32, #tpu.memory_space<vmem>>, vector<2x4xf32>,
    %24 = vector.extract_strided_slice %17 {offsets = [6, 0], sizes = [2, 4], strides = [1, 1]} : vector<32x4xf32> to vector<2x4xf32>
    %c0_11 = arith.constant 0 : index
    %c12 = arith.constant 12 : index
    %25 = vector.load %arg5[%c0_11, %c12] : memref<2x64xf32, #tpu.memory_space<vmem>>, vector<2x4xf32>
    tpu.vector_store %arg5[%c0_11, %c12], %24 {strides = array<i32>} : memref<2x64xf32, #tpu.memory_space<vmem>>, vector<2x4xf32>,
    %26 = vector.extract_strided_slice %17 {offsets = [8, 0], sizes = [2, 4], strides = [1, 1]} : vector<32x4xf32> to vector<2x4xf32>
    %c0_12 = arith.constant 0 : index
    %c16 = arith.constant 16 : index
    %27 = vector.load %arg5[%c0_12, %c16] : memref<2x64xf32, #tpu.memory_space<vmem>>, vector<2x4xf32>
    tpu.vector_store %arg5[%c0_12, %c16], %26 {strides = array<i32>} : memref<2x64xf32, #tpu.memory_space<vmem>>, vector<2x4xf32>,
    %28 = vector.extract_strided_slice %17 {offsets = [10, 0], sizes = [2, 4], strides = [1, 1]} : vector<32x4xf32> to vector<2x4xf32>
    %c0_13 = arith.constant 0 : index
    %c20 = arith.constant 20 : index
    %29 = vector.load %arg5[%c0_13, %c20] : memref<2x64xf32, #tpu.memory_space<vmem>>, vector<2x4xf32>
    tpu.vector_store %arg5[%c0_13, %c20], %28 {strides = array<i32>} : memref<2x64xf32, #tpu.memory_space<vmem>>, vector<2x4xf32>,
    %30 = vector.extract_strided_slice %17 {offsets = [12, 0], sizes = [2, 4], strides = [1, 1]} : vector<32x4xf32> to vector<2x4xf32>
    %c0_14 = arith.constant 0 : index
    %c24 = arith.constant 24 : index
    %31 = vector.load %arg5[%c0_14, %c24] : memref<2x64xf32, #tpu.memory_space<vmem>>, vector<2x4xf32>
    tpu.vector_store %arg5[%c0_14, %c24], %30 {strides = array<i32>} : memref<2x64xf32, #tpu.memory_space<vmem>>, vector<2x4xf32>,
    %32 = vector.extract_strided_slice %17 {offsets = [14, 0], sizes = [2, 4], strides = [1, 1]} : vector<32x4xf32> to vector<2x4xf32>
    %c0_15 = arith.constant 0 : index
    %c28 = arith.constant 28 : index
    %33 = vector.load %arg5[%c0_15, %c28] : memref<2x64xf32, #tpu.memory_space<vmem>>, vector<2x4xf32>
    tpu.vector_store %arg5[%c0_15, %c28], %32 {strides = array<i32>} : memref<2x64xf32, #tpu.memory_space<vmem>>, vector<2x4xf32>,
    %34 = vector.extract_strided_slice %17 {offsets = [16, 0], sizes = [2, 4], strides = [1, 1]} : vector<32x4xf32> to vector<2x4xf32>
    %c0_16 = arith.constant 0 : index
    %c32 = arith.constant 32 : index
    %35 = vector.load %arg5[%c0_16, %c32] : memref<2x64xf32, #tpu.memory_space<vmem>>, vector<2x4xf32>
    tpu.vector_store %arg5[%c0_16, %c32], %34 {strides = array<i32>} : memref<2x64xf32, #tpu.memory_space<vmem>>, vector<2x4xf32>,
    %36 = vector.extract_strided_slice %17 {offsets = [18, 0], sizes = [2, 4], strides = [1, 1]} : vector<32x4xf32> to vector<2x4xf32>
    %c0_17 = arith.constant 0 : index
    %c36 = arith.constant 36 : index
    %37 = vector.load %arg5[%c0_17, %c36] : memref<2x64xf32, #tpu.memory_space<vmem>>, vector<2x4xf32>
    tpu.vector_store %arg5[%c0_17, %c36], %36 {strides = array<i32>} : memref<2x64xf32, #tpu.memory_space<vmem>>, vector<2x4xf32>,
    %38 = vector.extract_strided_slice %17 {offsets = [20, 0], sizes = [2, 4], strides = [1, 1]} : vector<32x4xf32> to vector<2x4xf32>
    %c0_18 = arith.constant 0 : index
    %c40 = arith.constant 40 : index
    %39 = vector.load %arg5[%c0_18, %c40] : memref<2x64xf32, #tpu.memory_space<vmem>>, vector<2x4xf32>
    tpu.vector_store %arg5[%c0_18, %c40], %38 {strides = array<i32>} : memref<2x64xf32, #tpu.memory_space<vmem>>, vector<2x4xf32>,
    %40 = vector.extract_strided_slice %17 {offsets = [22, 0], sizes = [2, 4], strides = [1, 1]} : vector<32x4xf32> to vector<2x4xf32>
    %c0_19 = arith.constant 0 : index
    %c44 = arith.constant 44 : index
    %41 = vector.load %arg5[%c0_19, %c44] : memref<2x64xf32, #tpu.memory_space<vmem>>, vector<2x4xf32>
    tpu.vector_store %arg5[%c0_19, %c44], %40 {strides = array<i32>} : memref<2x64xf32, #tpu.memory_space<vmem>>, vector<2x4xf32>,
    %42 = vector.extract_strided_slice %17 {offsets = [24, 0], sizes = [2, 4], strides = [1, 1]} : vector<32x4xf32> to vector<2x4xf32>
    %c0_20 = arith.constant 0 : index
    %c48 = arith.constant 48 : index
    %43 = vector.load %arg5[%c0_20, %c48] : memref<2x64xf32, #tpu.memory_space<vmem>>, vector<2x4xf32>
    tpu.vector_store %arg5[%c0_20, %c48], %42 {strides = array<i32>} : memref<2x64xf32, #tpu.memory_space<vmem>>, vector<2x4xf32>,
    %44 = vector.extract_strided_slice %17 {offsets = [26, 0], sizes = [2, 4], strides = [1, 1]} : vector<32x4xf32> to vector<2x4xf32>
    %c0_21 = arith.constant 0 : index
    %c52 = arith.constant 52 : index
    %45 = vector.load %arg5[%c0_21, %c52] : memref<2x64xf32, #tpu.memory_space<vmem>>, vector<2x4xf32>
    tpu.vector_store %arg5[%c0_21, %c52], %44 {strides = array<i32>} : memref<2x64xf32, #tpu.memory_space<vmem>>, vector<2x4xf32>,
    %46 = vector.extract_strided_slice %17 {offsets = [28, 0], sizes = [2, 4], strides = [1, 1]} : vector<32x4xf32> to vector<2x4xf32>
    %c0_22 = arith.constant 0 : index
    %c56 = arith.constant 56 : index
    %47 = vector.load %arg5[%c0_22, %c56] : memref<2x64xf32, #tpu.memory_space<vmem>>, vector<2x4xf32>
    tpu.vector_store %arg5[%c0_22, %c56], %46 {strides = array<i32>} : memref<2x64xf32, #tpu.memory_space<vmem>>, vector<2x4xf32>,
    %48 = vector.extract_strided_slice %17 {offsets = [30, 0], sizes = [2, 4], strides = [1, 1]} : vector<32x4xf32> to vector<2x4xf32>
    %c0_23 = arith.constant 0 : index
    %c60 = arith.constant 60 : index
    %49 = vector.load %arg5[%c0_23, %c60] : memref<2x64xf32, #tpu.memory_space<vmem>>, vector<2x4xf32>
    tpu.vector_store %arg5[%c0_23, %c60], %48 {strides = array<i32>} : memref<2x64xf32, #tpu.memory_space<vmem>>, vector<2x4xf32>,
    %c0_24 = arith.constant 0 : index
    %c0_25 = arith.constant 0 : index
    %50 = vector.load %arg5[%c0_24, %c0_25] : memref<2x64xf32, #tpu.memory_space<vmem>>, vector<2x64xf32>
    %51 = arith.truncf %50 : vector<2x64xf32> to vector<2x64xbf16>
    %c0_26 = arith.constant 0 : index
    %c0_27 = arith.constant 0 : index
    %52 = vector.load %arg2[%c0_26, %c0_27] : memref<128x128xbf16, #tpu.memory_space<vmem>>, vector<64x32xbf16>
    %c1 = arith.constant 1 : index
    %c0_28 = arith.constant 0 : index
    %53 = vector.load %arg3[%c1, %c0_28] : memref<4x128xf32, #tpu.memory_space<vmem>>, vector<1x32xf32>
    %cst_29 = arith.constant dense<0.000000e+00> : vector<2x32xf32>
    %54 = tpu.matmul %51, %52, %cst_29 {dimension_numbers = #tpu.dot_dimension_numbers<[1], [0], [0], [1], [0, 0, 1, 1], [], []>} : vector<2x64xbf16>, vector<64x32xbf16>, vector<2x32xf32> -> vector<2x32xf32>
    %55 = vector.broadcast %53 : vector<1x32xf32> to vector<2x32xf32>
    %56 = arith.addf %54, %55 : vector<2x32xf32>
    %cst_30 = arith.constant 0.000000e+00 : f32
    %57 = vector.broadcast %cst_30 : f32 to vector<2x32xf32>
    %58 = arith.cmpf oge, %56, %57 : vector<2x32xf32>
    %cst_31 = arith.constant 0.00999999977 : f32
    %59 = vector.broadcast %cst_31 : f32 to vector<2x32xf32>
    %60 = arith.mulf %59, %56 : vector<2x32xf32>
    %61 = arith.select %58, %56, %60 : vector<2x32xi1>, vector<2x32xf32>
    %c64 = arith.constant 64 : index
    %c0_32 = arith.constant 0 : index
    %62 = vector.load %arg2[%c64, %c0_32] : memref<128x128xbf16, #tpu.memory_space<vmem>>, vector<32x32xbf16>
    %c2 = arith.constant 2 : index
    %c0_33 = arith.constant 0 : index
    %63 = vector.load %arg3[%c2, %c0_33] : memref<4x128xf32, #tpu.memory_space<vmem>>, vector<1x32xf32>
    %64 = arith.truncf %61 : vector<2x32xf32> to vector<2x32xbf16>
    %cst_34 = arith.constant dense<0.000000e+00> : vector<2x32xf32>
    %65 = tpu.matmul %64, %62, %cst_34 {dimension_numbers = #tpu.dot_dimension_numbers<[1], [0], [0], [1], [0, 0, 1, 1], [], []>} : vector<2x32xbf16>, vector<32x32xbf16>, vector<2x32xf32> -> vector<2x32xf32>
    %66 = vector.broadcast %63 : vector<1x32xf32> to vector<2x32xf32>
    %67 = arith.addf %65, %66 : vector<2x32xf32>
    %cst_35 = arith.constant 0.000000e+00 : f32
    %68 = vector.broadcast %cst_35 : f32 to vector<2x32xf32>
    %69 = arith.cmpf oge, %67, %68 : vector<2x32xf32>
    %cst_36 = arith.constant 0.00999999977 : f32
    %70 = vector.broadcast %cst_36 : f32 to vector<2x32xf32>
    %71 = arith.mulf %70, %67 : vector<2x32xf32>
    %72 = arith.select %69, %67, %71 : vector<2x32xi1>, vector<2x32xf32>
    %c96 = arith.constant 96 : index
    %c0_37 = arith.constant 0 : index
    %73 = vector.load %arg2[%c96, %c0_37] : memref<128x128xbf16, #tpu.memory_space<vmem>>, vector<32x6xbf16>
    %c3 = arith.constant 3 : index
    %c0_38 = arith.constant 0 : index
    %74 = vector.load %arg3[%c3, %c0_38] : memref<4x128xf32, #tpu.memory_space<vmem>>, vector<1x6xf32>
    %75 = arith.truncf %72 : vector<2x32xf32> to vector<2x32xbf16>
    %cst_39 = arith.constant dense<0.000000e+00> : vector<2x6xf32>
    %76 = tpu.matmul %75, %73, %cst_39 {dimension_numbers = #tpu.dot_dimension_numbers<[1], [0], [0], [1], [0, 0, 1, 1], [], []>} : vector<2x32xbf16>, vector<32x6xbf16>, vector<2x6xf32> -> vector<2x6xf32>
    %77 = vector.broadcast %74 : vector<1x6xf32> to vector<2x6xf32>
    %78 = arith.addf %76, %77 : vector<2x6xf32>
    %cst_40 = arith.constant 0.000000e+00 : f32
    %79 = vector.broadcast %cst_40 : f32 to vector<2x6xf32>
    %80 = arith.cmpf oge, %78, %79 : vector<2x6xf32>
    %cst_41 = arith.constant 0.00999999977 : f32
    %81 = vector.broadcast %cst_41 : f32 to vector<2x6xf32>
    %82 = arith.mulf %81, %78 : vector<2x6xf32>
    %83 = arith.select %80, %78, %82 : vector<2x6xi1>, vector<2x6xf32>
    %c0_42 = arith.constant 0 : index
    %c0_43 = arith.constant 0 : index
    %84 = vector.load %arg4[%c0_42, %c0_43] : memref<2x6xf32, #tpu.memory_space<vmem>>, vector<2x6xf32>
    tpu.vector_store %arg4[%c0_42, %c0_43], %83 {strides = array<i32>} : memref<2x6xf32, #tpu.memory_space<vmem>>, vector<2x6xf32>,
    return
  }
}

</mosaic_0001>

<llo_original>
// kernel: mlp_forward.1
$region0: #{mlp_forward.1}
  #allocation0 [shape = 'u32[]', space=smem, size = 0x4, offset = 0x4, fixed_abs, tag = 'smem constant byte address 0x4 - core index']
  #allocation1 [shape = 'u32[72,128]{1,0:T(1,128)}', space=vmem, size = 0x9000, scoped, tag = 'internal scratch']
  #allocation2 [shape = 'f32[2,64]{1,0:T(2,128)}', space=vmem, size = 0x400, scoped, tag = 'scratch operand']
  %s0 = inlined_call_operand.vmem [shape: bf16[128,256], index: 0, kind: input, shape index: {}]
  %s1 = inlined_call_operand.vmem [shape: bf16[256,4], index: 1, kind: input, shape index: {}]
  %s2 = inlined_call_operand.vmem [shape: bf16[128,128], index: 2, kind: input, shape index: {}]
  %s3 = inlined_call_operand.vmem [shape: f32[4,128], index: 3, kind: input, shape index: {}]
  %s4 = inlined_call_operand.hbm [shape: f32[2,6], index: 4, kind: output, shape index: {}]
  %s5 = sld [smem:[#allocation0]]
  $region26: #{mlp_forward.1} parent=0
    _
  %s7 = ssub.s32 1, %s5
  %s8 = scalar_select 0, %s7, %s5
  $region1: #{mlp_forward.1} parent=0
    #allocation3 [shape = 'u8[1024]{0}', space=vmem, size = 0x400, scoped, tag = 'output window, operand 0, single buffered']
    #allocation4 [shape = 's32[1]{0}', space=sflag, size = 0x4, scoped, tag = 'scoped memory for mlp_forward.1']
    %9 = vsyncpa [#allocation4], 0
    // Predicated region
    $region2: #{mlp_forward.1} parent=1 // pred_check
      _
    $region3: #{mlp_forward.1} parent=1 // pred_check_branch
      %11 = sbr.rel (0) target = $region5
    $region4: #{mlp_forward.1} parent=1 // pred_region
      _
    $region5: #{mlp_forward.1} parent=1 // pred_fallthru
      _
    // Predicated region
    $region6: #{mlp_forward.1} parent=1 // pred_check
      _
    $region7: #{mlp_forward.1} parent=1 // pred_check_branch
      %13 = sbr.rel (0) target = $region9
    $region8: #{mlp_forward.1} parent=1 // pred_region
      _
    $region9: #{mlp_forward.1} parent=1 // pred_fallthru
      _
    // Predicated region
    $region10: #{mlp_forward.1} parent=1 // pred_check
      _
    $region11: #{mlp_forward.1} parent=1 // pred_check_branch
      %15 = sbr.rel (0) target = $region13
    $region12: #{mlp_forward.1} parent=1 // pred_region
      _
    $region13: #{mlp_forward.1} parent=1 // pred_fallthru
      _
    // Predicated region
    $region14: #{mlp_forward.1} parent=1 // pred_check
      _
    $region15: #{mlp_forward.1} parent=1 // pred_check_branch
      %17 = sbr.rel (0) target = $region17
    $region16: #{mlp_forward.1} parent=1 // pred_region
      _
    $region17: #{mlp_forward.1} parent=1 // pred_fallthru
      _
    %v19 = vld [vmem:[%s0] sm:$0xff]
    %v20 = vld [vmem:[%s0 + $0x8] sm:$0xff]
    %v21 = vld [vmem:[%s0 + $0x10] sm:$0xff]
    %v22 = vld [vmem:[%s0 + $0x18] sm:$0xff]
    %v23 = vld [vmem:[%s0 + $0x20] sm:$0xff]
    %v24 = vld [vmem:[%s0 + $0x28] sm:$0xff]
    %v25 = vld [vmem:[%s0 + $0x30] sm:$0xff]
    %v26 = vld [vmem:[%s0 + $0x38] sm:$0xff]
    %v27 = vld [vmem:[%s0 + $0x40] sm:$0xff]
    %v28 = vld [vmem:[%s0 + $0x48] sm:$0xff]
    %v29 = vld [vmem:[%s0 + $0x50] sm:$0xff]
    %v30 = vld [vmem:[%s0 + $0x58] sm:$0xff]
    %v31 = vld [vmem:[%s0 + $0x60] sm:$0xff]
    %v32 = vld [vmem:[%s0 + $0x68] sm:$0xff]
    %v33 = vld [vmem:[%s0 + $0x70] sm:$0xff]
    %v34 = vld [vmem:[%s0 + $0x78] sm:$0xff]
    %v35 = vld [vmem:[%s1] sm:$0xf]
    %v36 = vld [vmem:[%s1 + $0x4] sm:$0xf]
    %v37 = vld [vmem:[%s1 + $0x8] sm:$0xf]
    %v38 = vld [vmem:[%s1 + $0xc] sm:$0xf]
    %v39 = vld [vmem:[%s1 + $0x10] sm:$0xf]
    %v40 = vld [vmem:[%s1 + $0x14] sm:$0xf]
    %v41 = vld [vmem:[%s1 + $0x18] sm:$0xf]
    %v42 = vld [vmem:[%s1 + $0x1c] sm:$0xf]
    %v43 = vld [vmem:[%s1 + $0x20] sm:$0xf]
    %v44 = vld [vmem:[%s1 + $0x24] sm:$0xf]
    %v45 = vld [vmem:[%s1 + $0x28] sm:$0xf]
    %v46 = vld [vmem:[%s1 + $0x2c] sm:$0xf]
    %v47 = vld [vmem:[%s1 + $0x30] sm:$0xf]
    %v48 = vld [vmem:[%s1 + $0x34] sm:$0xf]
    %v49 = vld [vmem:[%s1 + $0x38] sm:$0xf]
    %v50 = vld [vmem:[%s1 + $0x3c] sm:$0xf]
    %v51 = vld [vmem:[%s1 + $0x40] sm:$0xf]
    %v52 = vld [vmem:[%s1 + $0x44] sm:$0xf]
    %v53 = vld [vmem:[%s1 + $0x48] sm:$0xf]
    %v54 = vld [vmem:[%s1 + $0x4c] sm:$0xf]
    %v55 = vld [vmem:[%s1 + $0x50] sm:$0xf]
    %v56 = vld [vmem:[%s1 + $0x54] sm:$0xf]
    %v57 = vld [vmem:[%s1 + $0x58] sm:$0xf]
    %v58 = vld [vmem:[%s1 + $0x5c] sm:$0xf]
    %v59 = vld [vmem:[%s1 + $0x60] sm:$0xf]
    %v60 = vld [vmem:[%s1 + $0x64] sm:$0xf]
    %v61 = vld [vmem:[%s1 + $0x68] sm:$0xf]
    %v62 = vld [vmem:[%s1 + $0x6c] sm:$0xf]
    %v63 = vld [vmem:[%s1 + $0x70] sm:$0xf]
    %v64 = vld [vmem:[%s1 + $0x74] sm:$0xf]
    %v65 = vld [vmem:[%s1 + $0x78] sm:$0xf]
    %v66 = vld [vmem:[%s1 + $0x7c] sm:$0xf]
    %v83 = vunpack.c.l.b16 %v19
    %v84 = vunpack.c.h.b16 %v19
    %v85 = vunpack.c.l.b16 %v20
    %v86 = vunpack.c.h.b16 %v20
    %v87 = vunpack.c.l.b16 %v21
    %v88 = vunpack.c.h.b16 %v21
    %v89 = vunpack.c.l.b16 %v22
    %v90 = vunpack.c.h.b16 %v22
    %v91 = vunpack.c.l.b16 %v23
    %v92 = vunpack.c.h.b16 %v23
    %v93 = vunpack.c.l.b16 %v24
    %v94 = vunpack.c.h.b16 %v24
    %v95 = vunpack.c.l.b16 %v25
    %v96 = vunpack.c.h.b16 %v25
    %v97 = vunpack.c.l.b16 %v26
    %v98 = vunpack.c.h.b16 %v26
    %v99 = vunpack.c.l.b16 %v27
    %v100 = vunpack.c.h.b16 %v27
    %v101 = vunpack.c.l.b16 %v28
    %v102 = vunpack.c.h.b16 %v28
    %v103 = vunpack.c.l.b16 %v29
    %v104 = vunpack.c.h.b16 %v29
    %v105 = vunpack.c.l.b16 %v30
    %v106 = vunpack.c.h.b16 %v30
    %v107 = vunpack.c.l.b16 %v31
    %v108 = vunpack.c.h.b16 %v31
    %v109 = vunpack.c.l.b16 %v32
    %v110 = vunpack.c.h.b16 %v32
    %v111 = vunpack.c.l.b16 %v33
    %v112 = vunpack.c.h.b16 %v33
    %v113 = vunpack.c.l.b16 %v34
    %v114 = vunpack.c.h.b16 %v34
    %v115 = vpack.c.b16 %v85, %v83
    %v116 = vpack.c.b16 %v86, %v84
    %v117 = vpack.c.b16 %v89, %v87
    %v118 = vpack.c.b16 %v90, %v88
    %v119 = vpack.c.b16 %v93, %v91
    %v120 = vpack.c.b16 %v94, %v92
    %v121 = vpack.c.b16 %v97, %v95
    %v122 = vpack.c.b16 %v98, %v96
    %v123 = vpack.c.b16 %v101, %v99
    %v124 = vpack.c.b16 %v102, %v100
    %v125 = vpack.c.b16 %v105, %v103
    %v126 = vpack.c.b16 %v106, %v104
    %v127 = vpack.c.b16 %v109, %v107
    %v128 = vpack.c.b16 %v110, %v108
    %v129 = vpack.c.b16 %v113, %v111
    %v130 = vpack.c.b16 %v114, %v112
    %v179 = vunpack.c.l.b16 %v35
    %v180 = vunpack.c.l.b16 %v36
    %v181 = vunpack.c.l.b16 %v37
    %v182 = vunpack.c.l.b16 %v38
    %v183 = vunpack.c.l.b16 %v39
    %v184 = vunpack.c.l.b16 %v40
    %v185 = vunpack.c.l.b16 %v41
    %v186 = vunpack.c.l.b16 %v42
    %v187 = vunpack.c.l.b16 %v43
    %v188 = vunpack.c.l.b16 %v44
    %v189 = vunpack.c.l.b16 %v45
    %v190 = vunpack.c.l.b16 %v46
    %v191 = vunpack.c.l.b16 %v47
    %v192 = vunpack.c.l.b16 %v48
    %v193 = vunpack.c.l.b16 %v49
    %v194 = vunpack.c.l.b16 %v50
    %v195 = vunpack.c.l.b16 %v51
    %v196 = vunpack.c.l.b16 %v52
    %v197 = vunpack.c.l.b16 %v53
    %v198 = vunpack.c.l.b16 %v54
    %v199 = vunpack.c.l.b16 %v55
    %v200 = vunpack.c.l.b16 %v56
    %v201 = vunpack.c.l.b16 %v57
    %v202 = vunpack.c.l.b16 %v58
    %v203 = vunpack.c.l.b16 %v59
    %v204 = vunpack.c.l.b16 %v60
    %v205 = vunpack.c.l.b16 %v61
    %v206 = vunpack.c.l.b16 %v62
    %v207 = vunpack.c.l.b16 %v63
    %v208 = vunpack.c.l.b16 %v64
    %v209 = vunpack.c.l.b16 %v65
    %v210 = vunpack.c.l.b16 %v66
    %v211 = vpack.c.b16 %v180, %v179
    %v212 = vpack.c.b16 %v182, %v181
    %v213 = vpack.c.b16 %v184, %v183
    %v214 = vpack.c.b16 %v186, %v185
    %v215 = vpack.c.b16 %v188, %v187
    %v216 = vpack.c.b16 %v190, %v189
    %v217 = vpack.c.b16 %v192, %v191
    %v218 = vpack.c.b16 %v194, %v193
    %v219 = vpack.c.b16 %v196, %v195
    %v220 = vpack.c.b16 %v198, %v197
    %v221 = vpack.c.b16 %v200, %v199
    %v222 = vpack.c.b16 %v202, %v201
    %v223 = vpack.c.b16 %v204, %v203
    %v224 = vpack.c.b16 %v206, %v205
    %v225 = vpack.c.b16 %v208, %v207
    %v226 = vpack.c.b16 %v210, %v209
    %243 = vmatpush.bf16.msra.mxu0 %v218
    %244 = vmatpush.bf16.msra.mxu0 %v217
    %245 = vmatpush.bf16.msra.mxu0 %v216
    %246 = vmatpush.bf16.msra.mxu0 %v215
    %247 = vmatpush.bf16.msra.mxu0 %v214
    %248 = vmatpush.bf16.msra.mxu0 %v213
    %249 = vmatpush.bf16.msra.mxu0 %v212
    %250 = vmatpush.bf16.msra.mxu0 %v211
    %251 = vmatmul.bf16.gmra.mxu0 %v115
    %v252 = vpop.f32.mrf.mxu0
    %v253 = vadd.f32 0.0, %v252
    %v254 = vpop.f32.mrf.mxu0
    %v255 = vadd.f32 0.0, %v254
    %256 = vmatmul.bf16.gmra.mxu0 %v117
    %v257 = vpop.f32.mrf.mxu0
    %v258 = vadd.f32 0.0, %v257
    %v259 = vpop.f32.mrf.mxu0
    %v260 = vadd.f32 0.0, %v259
    %261 = vmatmul.bf16.gmra.mxu0 %v119
    %v262 = vpop.f32.mrf.mxu0
    %v263 = vadd.f32 0.0, %v262
    %v264 = vpop.f32.mrf.mxu0
    %v265 = vadd.f32 0.0, %v264
    %266 = vmatmul.bf16.gmra.mxu0 %v121
    %v267 = vpop.f32.mrf.mxu0
    %v268 = vadd.f32 0.0, %v267
    %v269 = vpop.f32.mrf.mxu0
    %v270 = vadd.f32 0.0, %v269
    %271 = vmatmul.bf16.gmra.mxu0 %v123
    %v272 = vpop.f32.mrf.mxu0
    %v273 = vadd.f32 0.0, %v272
    %v274 = vpop.f32.mrf.mxu0
    %v275 = vadd.f32 0.0, %v274
    %276 = vmatmul.bf16.gmra.mxu0 %v125
    %v277 = vpop.f32.mrf.mxu0
    %v278 = vadd.f32 0.0, %v277
    %v279 = vpop.f32.mrf.mxu0
    %v280 = vadd.f32 0.0, %v279
    %281 = vmatmul.bf16.gmra.mxu0 %v127
    %v282 = vpop.f32.mrf.mxu0
    %v283 = vadd.f32 0.0, %v282
    %v284 = vpop.f32.mrf.mxu0
    %v285 = vadd.f32 0.0, %v284
    %286 = vmatmul.bf16.gmra.mxu0 %v129
    %v287 = vpop.f32.mrf.mxu0
    %v288 = vadd.f32 0.0, %v287
    %v289 = vpop.f32.mrf.mxu0
    %v290 = vadd.f32 0.0, %v289
    %291 = vdwg.mxu0
    %292 = vmatpush.bf16.msra.mxu0 %v226
    %293 = vmatpush.bf16.msra.mxu0 %v225
    %294 = vmatpush.bf16.msra.mxu0 %v224
    %295 = vmatpush.bf16.msra.mxu0 %v223
    %296 = vmatpush.bf16.msra.mxu0 %v222
    %297 = vmatpush.bf16.msra.mxu0 %v221
    %298 = vmatpush.bf16.msra.mxu0 %v220
    %299 = vmatpush.bf16.msra.mxu0 %v219
    %300 = vmatmul.bf16.gmra.mxu0 %v116
    %v301 = vpop.f32.mrf.mxu0
    %v302 = vadd.f32 %v253, %v301
    %v303 = vpop.f32.mrf.mxu0
    %v304 = vadd.f32 %v255, %v303
    %305 = vmatmul.bf16.gmra.mxu0 %v118
    %v306 = vpop.f32.mrf.mxu0
    %v307 = vadd.f32 %v258, %v306
    %v308 = vpop.f32.mrf.mxu0
    %v309 = vadd.f32 %v260, %v308
    %310 = vmatmul.bf16.gmra.mxu0 %v120
    %v311 = vpop.f32.mrf.mxu0
    %v312 = vadd.f32 %v263, %v311
    %v313 = vpop.f32.mrf.mxu0
    %v314 = vadd.f32 %v265, %v313
    %315 = vmatmul.bf16.gmra.mxu0 %v122
    %v316 = vpop.f32.mrf.mxu0
    %v317 = vadd.f32 %v268, %v316
    %v318 = vpop.f32.mrf.mxu0
    %v319 = vadd.f32 %v270, %v318
    %320 = vmatmul.bf16.gmra.mxu0 %v124
    %v321 = vpop.f32.mrf.mxu0
    %v322 = vadd.f32 %v273, %v321
    %v323 = vpop.f32.mrf.mxu0
    %v324 = vadd.f32 %v275, %v323
    %325 = vmatmul.bf16.gmra.mxu0 %v126
    %v326 = vpop.f32.mrf.mxu0
    %v327 = vadd.f32 %v278, %v326
    %v328 = vpop.f32.mrf.mxu0
    %v329 = vadd.f32 %v280, %v328
    %330 = vmatmul.bf16.gmra.mxu0 %v128
    %v331 = vpop.f32.mrf.mxu0
    %v332 = vadd.f32 %v283, %v331
    %v333 = vpop.f32.mrf.mxu0
    %v334 = vadd.f32 %v285, %v333
    %335 = vmatmul.bf16.gmra.mxu0 %v130
    %v336 = vpop.f32.mrf.mxu0
    %v337 = vadd.f32 %v288, %v336
    %v338 = vpop.f32.mrf.mxu0
    %v339 = vadd.f32 %v290, %v338
    %340 = vdwg.mxu0
    %v341 = vmax.f32 %v302, %v312
    %v342 = vmax.f32 %v304, %v314
    %v343 = vmax.f32 %v307, %v317
    %v344 = vmax.f32 %v309, %v319
    %v345 = vmax.f32 %v322, %v332
    %v346 = vmax.f32 %v324, %v334
    %v347 = vmax.f32 %v327, %v337
    %v348 = vmax.f32 %v329, %v339
    %v349 = vmax.f32 %v341, %v345
    %v350 = vmax.f32 %v342, %v346
    %v351 = vmax.f32 %v343, %v347
    %v352 = vmax.f32 %v344, %v348
    %v353 = vld [vmem:[%s3] sm:$0x1]
    %v354 = vperm.slane %v353, 0
    %v355 = vadd.f32 %v349, %v354
    %v356 = vadd.f32 %v350, %v354
    %v357 = vadd.f32 %v351, %v354
    %v358 = vadd.f32 %v352, %v354
    %vm359 = vcmp.ge.f32.partialorder %v355, 0.0
    %vm360 = vcmp.ge.f32.partialorder %v356, 0.0
    %vm361 = vcmp.ge.f32.partialorder %v357, 0.0
    %vm362 = vcmp.ge.f32.partialorder %v358, 0.0
    %v363 = vmul.f32 %v355, 0.01
    %v364 = vmul.f32 %v356, 0.01
    %v365 = vmul.f32 %v357, 0.01
    %v366 = vmul.f32 %v358, 0.01
    %v367 = vsel %vm359, %v355, %v363
    %v368 = vsel %vm360, %v356, %v364
    %v369 = vsel %vm361, %v357, %v365
    %v370 = vsel %vm362, %v358, %v366
    %vm371 = vcmask 25600
    %372 = vst.msk [vmem:[#allocation2] sm:$0x3] %vm371, %v367
    %374 = vrot.lane.b32.xlu0 %v367, 4
    %v375 = vpop.permute.xlu0 %374
    %vm377 = vcmask 60450
    %378 = vst.msk [vmem:[#allocation2 - $0x2] sm:$0xc] %vm377, %v375
    %379 = vrot.lane.b32.xlu0 %v367, 8
    %v380 = vpop.permute.xlu0 %379
    %vm382 = vcmask 95300
    %383 = vst.msk [vmem:[#allocation2 - $0x4] sm:$0x30] %vm382, %v380
    %384 = vrot.lane.b32.xlu0 %v367, 12
    %v385 = vpop.permute.xlu0 %384
    %vm387 = vcmask 130150
    %388 = vst.msk [vmem:[#allocation2 - $0x6] sm:$0xc0] %vm387, %v385
    %390 = vrot.lane.b32.xlu0 %v368, 16
    %v391 = vpop.permute.xlu0 %390
    %vm393 = vcmask 156800
    %394 = vst.msk [vmem:[#allocation2] sm:$0x3] %vm393, %v391
    %395 = vrot.lane.b32.xlu0 %v368, 20
    %v396 = vpop.permute.xlu0 %395
    %vm398 = vcmask 191650
    %399 = vst.msk [vmem:[#allocation2 - $0x2] sm:$0xc] %vm398, %v396
    %400 = vrot.lane.b32.xlu0 %v368, 24
    %v401 = vpop.permute.xlu0 %400
    %vm403 = vcmask 226500
    %404 = vst.msk [vmem:[#allocation2 - $0x4] sm:$0x30] %vm403, %v401
    %405 = vrot.lane.b32.xlu0 %v368, 28
    %v406 = vpop.permute.xlu0 %405
    %vm408 = vcmask 261350
    %409 = vst.msk [vmem:[#allocation2 - $0x6] sm:$0xc0] %vm408, %v406
    %411 = vrot.lane.b32.xlu0 %v369, 32
    %v412 = vpop.permute.xlu0 %411
    %vm414 = vcmask 288000
    %415 = vst.msk [vmem:[#allocation2] sm:$0x3] %vm414, %v412
    %416 = vrot.lane.b32.xlu0 %v369, 36
    %v417 = vpop.permute.xlu0 %416
    %vm419 = vcmask 322850
    %420 = vst.msk [vmem:[#allocation2 - $0x2] sm:$0xc] %vm419, %v417
    %421 = vrot.lane.b32.xlu0 %v369, 40
    %v422 = vpop.permute.xlu0 %421
    %vm424 = vcmask 357700
    %425 = vst.msk [vmem:[#allocation2 - $0x4] sm:$0x30] %vm424, %v422
    %426 = vrot.lane.b32.xlu0 %v369, 44
    %v427 = vpop.permute.xlu0 %426
    %vm429 = vcmask 392550
    %430 = vst.msk [vmem:[#allocation2 - $0x6] sm:$0xc0] %vm429, %v427
    %432 = vrot.lane.b32.xlu0 %v370, 48
    %v433 = vpop.permute.xlu0 %432
    %vm435 = vcmask 419200
    %436 = vst.msk [vmem:[#allocation2] sm:$0x3] %vm435, %v433
    %437 = vrot.lane.b32.xlu0 %v370, 52
    %v438 = vpop.permute.xlu0 %437
    %vm440 = vcmask 454050
    %441 = vst.msk [vmem:[#allocation2 - $0x2] sm:$0xc] %vm440, %v438
    %442 = vrot.lane.b32.xlu0 %v370, 56
    %v443 = vpop.permute.xlu0 %442
    %vm445 = vcmask 488900
    %446 = vst.msk [vmem:[#allocation2 - $0x4] sm:$0x30] %vm445, %v443
    %447 = vrot.lane.b32.xlu0 %v370, 60
    %v448 = vpop.permute.xlu0 %447
    %vm450 = vcmask 523750
    %451 = vst.msk [vmem:[#allocation2 - $0x6] sm:$0xc0] %vm450, %v448
    %v452 = vld [vmem:[#allocation2] sm:$0x3]
    %v453 = vpack.c.bf16 %v452, %v452
    %v454 = vld [vmem:[%s2] sm:$0xf]
    %v455 = vld [vmem:[%s2 + $0x4] sm:$0xf]
    %v456 = vld [vmem:[%s2 + $0x8] sm:$0xf]
    %v457 = vld [vmem:[%s2 + $0xc] sm:$0xf]
    %v458 = vld [vmem:[%s2 + $0x10] sm:$0xf]
    %v459 = vld [vmem:[%s2 + $0x14] sm:$0xf]
    %v460 = vld [vmem:[%s2 + $0x18] sm:$0xf]
    %v461 = vld [vmem:[%s2 + $0x1c] sm:$0xf]
    %v462 = vld [vmem:[%s3 + $0x1] sm:$0x1]
    %v463 = vperm.slane %v462, 0
    %v472 = vunpack.c.l.b16 %v454
    %v473 = vunpack.c.l.b16 %v455
    %v474 = vunpack.c.l.b16 %v456
    %v475 = vunpack.c.l.b16 %v457
    %v476 = vunpack.c.l.b16 %v458
    %v477 = vunpack.c.l.b16 %v459
    %v478 = vunpack.c.l.b16 %v460
    %v479 = vunpack.c.l.b16 %v461
    %v480 = vpack.c.b16 %v473, %v472
    %v481 = vpack.c.b16 %v475, %v474
    %v482 = vpack.c.b16 %v477, %v476
    %v483 = vpack.c.b16 %v479, %v478
    %vm488 = vcmask 523264
    %v490 = vsel %vm488, %v453, 0
    %492 = vmatpush.bf16.msra.mxu0 0
    %493 = vmatpush.bf16.msra.mxu0 0
    %494 = vmatpush.bf16.msra.mxu0 0
    %495 = vmatpush.bf16.msra.mxu0 0
    %496 = vmatpush.bf16.msra.mxu0 %v483
    %497 = vmatpush.bf16.msra.mxu0 %v482
    %498 = vmatpush.bf16.msra.mxu0 %v481
    %499 = vmatpush.bf16.msra.mxu0 %v480
    %500 = vmatmul.bf16.gmra.mxu0 %v490
    %v501 = vpop.f32.mrf.mxu0
    %v502 = vadd.f32 %v463, %v501
    %v503 = vpop.f32.mrf.mxu0
    %504 = vdwg.mxu0
    %vm505 = vcmp.ge.f32.partialorder %v502, 0.0
    %v506 = vmul.f32 %v502, 0.01
    %v507 = vsel %vm505, %v502, %v506
    %v508 = vld [vmem:[%s2 + $0x20] sm:$0xf]
    %v509 = vld [vmem:[%s2 + $0x24] sm:$0xf]
    %v510 = vld [vmem:[%s2 + $0x28] sm:$0xf]
    %v511 = vld [vmem:[%s2 + $0x2c] sm:$0xf]
    %v512 = vld [vmem:[%s3 + $0x2] sm:$0x1]
    %v513 = vpack.c.bf16 %v507, %v507
    %v514 = vperm.slane %v512, 0
    %v519 = vunpack.c.l.b16 %v508
    %v520 = vunpack.c.l.b16 %v509
    %v521 = vunpack.c.l.b16 %v510
    %v522 = vunpack.c.l.b16 %v511
    %v523 = vpack.c.b16 %v520, %v519
    %v524 = vpack.c.b16 %v522, %v521
    %vm527 = vcmask 261120
    %v529 = vsel %vm527, %v513, 0
    %531 = vmatpush.bf16.msra.mxu0 0
    %532 = vmatpush.bf16.msra.mxu0 0
    %533 = vmatpush.bf16.msra.mxu0 0
    %534 = vmatpush.bf16.msra.mxu0 0
    %535 = vmatpush.bf16.msra.mxu0 0
    %536 = vmatpush.bf16.msra.mxu0 0
    %537 = vmatpush.bf16.msra.mxu0 %v524
    %538 = vmatpush.bf16.msra.mxu0 %v523
    %539 = vmatmul.bf16.gmra.mxu0 %v529
    %v540 = vpop.f32.mrf.mxu0
    %v541 = vadd.f32 %v514, %v540
    %v542 = vpop.f32.mrf.mxu0
    %543 = vdwg.mxu0
    %vm544 = vcmp.ge.f32.partialorder %v541, 0.0
    %v545 = vmul.f32 %v541, 0.01
    %v546 = vsel %vm544, %v541, %v545
    %v547 = vld [vmem:[%s2 + $0x30] sm:$0xf]
    %v548 = vld [vmem:[%s2 + $0x34] sm:$0xf]
    %v549 = vld [vmem:[%s2 + $0x38] sm:$0xf]
    %v550 = vld [vmem:[%s2 + $0x3c] sm:$0xf]
    %v551 = vld [vmem:[%s3 + $0x3] sm:$0x1]
    %v552 = vpack.c.bf16 %v546, %v546
    %v553 = vperm.slane %v551, 0
    %v558 = vunpack.c.l.b16 %v547
    %v559 = vunpack.c.l.b16 %v548
    %v560 = vunpack.c.l.b16 %v549
    %v561 = vunpack.c.l.b16 %v550
    %v562 = vpack.c.b16 %v559, %v558
    %v563 = vpack.c.b16 %v561, %v560
    %v567 = vsel %vm527, %v552, 0
    %569 = vmatpush.bf16.msra.mxu0 0
    %570 = vmatpush.bf16.msra.mxu0 0
    %571 = vmatpush.bf16.msra.mxu0 0
    %572 = vmatpush.bf16.msra.mxu0 0
    %573 = vmatpush.bf16.msra.mxu0 0
    %574 = vmatpush.bf16.msra.mxu0 0
    %575 = vmatpush.bf16.msra.mxu0 %v563
    %576 = vmatpush.bf16.msra.mxu0 %v562
    %577 = vmatmul.bf16.gmra.mxu0 %v567
    %v578 = vpop.f32.mrf.mxu0
    %v579 = vadd.f32 %v553, %v578
    %v580 = vpop.f32.mrf.mxu0
    %581 = vdwg.mxu0
    %vm582 = vcmp.ge.f32.partialorder %v579, 0.0
    %v583 = vmul.f32 %v579, 0.01
    %v584 = vsel %vm582, %v579, %v583
    %vm585 = vcmask 41984
    %586 = vst.msk [vmem:[#allocation3] sm:$0x3] %vm585, %v584
    // Predicated region
    $region18: #{mlp_forward.1} parent=1 // pred_check
      _
    $region19: #{mlp_forward.1} parent=1 // pred_check_branch
      %588 = sbr.rel (0) target = $region21
    $region20: #{mlp_forward.1} parent=1 // pred_region
      %590 = vsyncadd [#allocation4], 0
      %s592 = sshll.u32 [#allocation3], 4
      %s593 = int_to_ptr.vmem [resolvable:$true] %s592
      %s594 = sshll.u32 %s4, 4
      %s595 = int_to_ptr.hbm [resolvable:$true] %s594
      %597 = dma.vmem_to_hbm [thread:$0]  %s593, 32, %s595, [#allocation4]
    $region21: #{mlp_forward.1} parent=1 // pred_fallthru
      _
    // Predicated region
    $region22: #{mlp_forward.1} parent=1 // pred_check
      _
    $region23: #{mlp_forward.1} parent=1 // pred_check_branch
      %599 = sbr.rel (0) target = $region25
    $region24: #{mlp_forward.1} parent=1 // pred_region
      %601 = dma.done [#allocation4], 32
    $region25: #{mlp_forward.1} parent=1 // pred_fallthru
      _
    %602 = vsyncpa [#allocation4], 1

</llo_original>
